<compile_context>
chip_gen: v7x
topology: tpu7x:2x2x1
jax: 0.10.0
libtpu: 0.0.40
codegen_flags: <defaults>
</compile_context>

<pallas_src>
import jax
import jax.numpy as jnp
import numpy as np
from jax.experimental import pallas as pl
from jax.experimental.pallas import tpu as pltpu


# ----------------------------------------------------------------------------
# Helpers
# ----------------------------------------------------------------------------
def _round_up(x, m):
    return ((x + m - 1) // m) * m


def _pick_tile(dim, candidates):
    for t in candidates:
        if t <= dim and dim % t == 0:
            return t
    return dim


# ----------------------------------------------------------------------------
# Pallas kernels
# ----------------------------------------------------------------------------
def _linear_kernel(x_ref, w_ref, b_ref, o_ref):
    """One output tile of o = x @ w + b.  x:(rt,K) w:(K,vt) b:(1,vt) o:(rt,vt)."""
    o_ref[...] = (jnp.dot(x_ref[...], w_ref[...],
                          preferred_element_type=jnp.float32)
                  + b_ref[...]).astype(o_ref.dtype)


def _lstm_recurrent_kernel(gx_ref, whh_ref, h0_ref, c0_ref,
                           out_ref, hN_ref, cN_ref, h_sc, c_sc):
    """LSTM recurrence with the input projection hoisted out.

    gx_ref:  (1, Bp, 4*Hp) precomputed x@W_ih + b for the current time step
    whh_ref: (Hp, 4*Hp)    hidden->gates weight (pre-transposed, gate-padded)
    h0/c0:   (Bp, Hp)      initial hidden / cell state
    out_ref: (1, Bp, Hp)   per-step hidden output block
    hN/cN:   (Bp, Hp)      final hidden / cell state (written at last step)
    h_sc/c_sc: VMEM scratch carrying (h, c) across grid steps
    """
    t = pl.program_id(0)

    @pl.when(t == 0)
    def _():
        h_sc[...] = h0_ref[...]
        c_sc[...] = c0_ref[...]

    h = h_sc[...]
    c = c_sc[...]

    gates = gx_ref[0] + jnp.dot(h, whh_ref[...],
                                preferred_element_type=jnp.float32)  # (Bp, 4Hp)

    Hp = h.shape[-1]
    i_g = jax.nn.sigmoid(gates[:, 0 * Hp:1 * Hp])
    f_g = jax.nn.sigmoid(gates[:, 1 * Hp:2 * Hp])
    g_g = jnp.tanh(gates[:, 2 * Hp:3 * Hp])
    o_g = jax.nn.sigmoid(gates[:, 3 * Hp:4 * Hp])

    c_new = f_g * c + i_g * g_g
    h_new = o_g * jnp.tanh(c_new)

    h_sc[...] = h_new
    c_sc[...] = c_new
    out_ref[0] = h_new.astype(out_ref.dtype)

    @pl.when(t == pl.num_programs(0) - 1)
    def _():
        hN_ref[...] = h_new.astype(hN_ref.dtype)
        cN_ref[...] = c_new.astype(cN_ref.dtype)


# ----------------------------------------------------------------------------
# Wrappers
# ----------------------------------------------------------------------------
def linear_pallas(x, w, b2d):
    """Tiled o = x @ w + b.  x: (N, K), w: (K, V), b2d: (1, V).  V % 128 == 0."""
    N, K = x.shape
    V = w.shape[1]
    Np = _round_up(N, 8)
    if Np != N:
        x = jnp.pad(x, ((0, Np - N), (0, 0)))
    r_tile = _pick_tile(Np, (512, 256, 128, 64, 32, 16, 8))
    v_tile = _pick_tile(V, (512, 256, 128))
    out = pl.pallas_call(
        _linear_kernel,
        grid=(Np // r_tile, V // v_tile),
        in_specs=[
            pl.BlockSpec((r_tile, K), lambda i, j: (i, 0)),
            pl.BlockSpec((K, v_tile), lambda i, j: (0, j)),
            pl.BlockSpec((1, v_tile), lambda i, j: (0, j)),
        ],
        out_specs=pl.BlockSpec((r_tile, v_tile), lambda i, j: (i, j)),
        out_shape=jax.ShapeDtypeStruct((Np, V), jnp.float32),
        compiler_params=pltpu.CompilerParams(
            dimension_semantics=("parallel", "parallel")),
    )(x, w, b2d)
    return out[:N]


def lstm_layer_pallas(gates_x, whh_p, h0_p, c0_p):
    """gates_x: (T, Bp, 4Hp) precomputed x@W_ih + b.  Returns (out, hN, cN)."""
    T, Bp, G4 = gates_x.shape
    Hp = h0_p.shape[-1]
    out, hN, cN = pl.pallas_call(
        _lstm_recurrent_kernel,
        grid=(T,),
        in_specs=[
            pl.BlockSpec((1, Bp, G4), lambda t: (t, 0, 0)),
            pl.BlockSpec((Hp, G4), lambda t: (0, 0)),
            pl.BlockSpec((Bp, Hp), lambda t: (0, 0)),
            pl.BlockSpec((Bp, Hp), lambda t: (0, 0)),
        ],
        out_specs=[
            pl.BlockSpec((1, Bp, Hp), lambda t: (t, 0, 0)),
            pl.BlockSpec((Bp, Hp), lambda t: (0, 0)),
            pl.BlockSpec((Bp, Hp), lambda t: (0, 0)),
        ],
        out_shape=[
            jax.ShapeDtypeStruct((T, Bp, Hp), jnp.float32),
            jax.ShapeDtypeStruct((Bp, Hp), jnp.float32),
            jax.ShapeDtypeStruct((Bp, Hp), jnp.float32),
        ],
        scratch_shapes=[
            pltpu.VMEM((Bp, Hp), jnp.float32),
            pltpu.VMEM((Bp, Hp), jnp.float32),
        ],
        # NOTE: the time axis carries the (h, c) state in VMEM scratch and writes
        # hN/cN only at the last step; it MUST stay "arbitrary" (sequential).
        compiler_params=pltpu.CompilerParams(
            dimension_semantics=("arbitrary",)),
    )(gates_x, whh_p, h0_p, c0_p)
    return out, hN, cN


# ----------------------------------------------------------------------------
# Model (parameters + forward), mirroring RNNModel with rnn_type='LSTM'
# ----------------------------------------------------------------------------
class RNNModelPallas:
    LANE = 128
    SUBLANE = 8

    def __init__(self, ntokens, emsize, nhid, nlayers, key):
        self.ntokens = list(ntokens)
        self.num_channels = len(ntokens)
        self.emsize = emsize
        self.nhid = nhid
        self.nlayers = nlayers
        self.nhid_p = _round_up(nhid, self.LANE)

        def xavier_normal(k, shape):
            fan_in, fan_out = shape[1], shape[0]
            std = float(np.sqrt(2.0 / (fan_in + fan_out)))
            return jax.random.normal(k, shape, jnp.float32) * std

        keys = iter(jax.random.split(key, 4 * self.num_channels + 8 * nlayers + 4))

        # Embedding tables: (ntokens[c], emsize)
        self.enc_weights = [xavier_normal(next(keys), (ntokens[c], emsize))
                            for c in range(self.num_channels)]

        H, Hp = nhid, self.nhid_p

        def pad_gate_cols(w_t):
            """(rows, 4H) -> (rows, 4Hp) with each gate block zero-padded H->Hp."""
            rows = w_t.shape[0]
            w4 = w_t.reshape(rows, 4, H)
            w4 = jnp.pad(w4, ((0, 0), (0, 0), (0, Hp - H)))
            return w4.reshape(rows, 4 * Hp)

        # LSTM params per layer. PyTorch layouts kept for the reference; kernel
        # uses pre-transposed, gate-padded layouts.
        self.lstm_params = []
        for layer in range(nlayers):
            in_size = emsize * self.num_channels if layer == 0 else nhid
            stdv = 1.0 / float(np.sqrt(nhid))
            w_ih = jax.random.uniform(next(keys), (4 * H, in_size),
                                      jnp.float32, -stdv, stdv)
            w_hh = jax.random.uniform(next(keys), (4 * H, H),
                                      jnp.float32, -stdv, stdv)
            b_ih = jax.random.uniform(next(keys), (4 * H,),
                                      jnp.float32, -stdv, stdv)
            b_hh = jax.random.uniform(next(keys), (4 * H,),
                                      jnp.float32, -stdv, stdv)

            wih_t = pad_gate_cols(jnp.asarray(w_ih.T))          # (in_size, 4Hp)
            if layer > 0:
                # Input to layers > 0 is the Hp-padded stream; pad zero rows.
                wih_t = jnp.pad(wih_t, ((0, Hp - H), (0, 0)))   # (Hp, 4Hp)
            whh_t = pad_gate_cols(jnp.asarray(w_hh.T))          # (H, 4Hp)
            whh_t = jnp.pad(whh_t, ((0, Hp - H), (0, 0)))       # (Hp, 4Hp)
            b = (b_ih + b_hh).reshape(4, H)
            b = jnp.pad(b, ((0, 0), (0, Hp - H))).reshape(1, 4 * Hp)

            self.lstm_params.append(dict(
                w_ih=w_ih, w_hh=w_hh, b_ih=b_ih, b_hh=b_hh,      # reference layouts
                wih_t_p=wih_t, whh_t_p=whh_t, b2d_p=b))          # kernel layouts

        # Decoders: PyTorch layouts (ntokens[c], nhid) + fused, 128-padded layout.
        self.dec_weights = [xavier_normal(next(keys), (ntokens[c], nhid))
                            for c in range(self.num_channels)]
        self.dec_biases = [jnp.zeros((ntokens[c],), jnp.float32)
                           for c in range(self.num_channels)]
        vtot = sum(self.ntokens)
        self.vocab_padded = _round_up(vtot, self.LANE)
        wdec = jnp.concatenate([w.T for w in self.dec_weights], axis=1)  # (H, Vtot)
        wdec = jnp.pad(wdec, ((0, Hp - H), (0, self.vocab_padded - vtot)))
        bdec = jnp.concatenate(self.dec_biases)
        bdec = jnp.pad(bdec, (0, self.vocab_padded - vtot))
        self.dec_w_fused = wdec            # (Hp, Vp)
        self.dec_b_fused = bdec[None, :]   # (1, Vp)
        self.vocab_offsets = np.cumsum([0] + self.ntokens)

    def init_hidden(self, bsz):
        z = jnp.zeros((self.nlayers, bsz, self.nhid), jnp.float32)
        return (z, z)

    def forward(self, inputs, hidden):
        """inputs: list of int32 (batch, seq) arrays, one per channel."""
        h0_all, c0_all = hidden
        B, T = inputs[0].shape
        H, Hp = self.nhid, self.nhid_p
        Bp = _round_up(B, self.SUBLANE)

        # Embedding lookups (gather glue stays in plain JAX), time-major like torch.t.
        embs = [jnp.take(self.enc_weights[c], inputs[c].T, axis=0)
                for c in range(self.num_channels)]      # each (T, B, emsize)
        x = jnp.concatenate(embs, axis=2)                # (T, B, emsize*C)
        # Pad the batch once to a sublane-friendly size; padded rows are independent
        # and get sliced off at the end.
        x = jnp.pad(x, ((0, 0), (0, Bp - B), (0, 0)))    # (T, Bp, In)

        hN, cN = [], []
        for layer in range(self.nlayers):
            p = self.lstm_params[layer]
            Tb, Bb, In = x.shape
            # (1) hoisted input->gate projection: one big parallel matmul.
            gates_x = linear_pallas(x.reshape(Tb * Bb, In), p['wih_t_p'], p['b2d_p'])
            gates_x = gates_x.reshape(Tb, Bb, 4 * Hp)
            # (2) sequential recurrence: only h @ W_hh per step.
            h0_p = jnp.pad(h0_all[layer], ((0, Bp - B), (0, Hp - H)))
            c0_p = jnp.pad(c0_all[layer], ((0, Bp - B), (0, Hp - H)))
            x, h_l, c_l = lstm_layer_pallas(gates_x, p['whh_t_p'], h0_p, c0_p)
            hN.append(h_l[:B, :H])
            cN.append(c_l[:B, :H])

        output = jnp.transpose(x, (1, 0, 2))[:B]         # (B, T, Hp)
        flat = output.reshape(B * T, Hp)

        # (3) fused, lane-dense decoder: one matmul over sum(ntokens) padded to 128.
        dec_all = linear_pallas(flat, self.dec_w_fused, self.dec_b_fused)  # (B*T, Vp)
        decs = []
        for c in range(self.num_channels):
            lo, hi = int(self.vocab_offsets[c]), int(self.vocab_offsets[c + 1])
            decs.append(dec_all[:, lo:hi].reshape(B, T, self.ntokens[c]))
        return decs, (jnp.stack(hN, 0), jnp.stack(cN, 0))


# ----------------------------------------------------------------------------
# Pure-JAX reference (for a numerical sanity check)
# ----------------------------------------------------------------------------
def _reference_forward(model, inputs, hidden):
    h0_all, c0_all = hidden
    embs = [jnp.take(model.enc_weights[c], inputs[c].T, axis=0)
            for c in range(model.num_channels)]
    x = jnp.concatenate(embs, axis=2)

    def run_layer(x, p, h0, c0):
        def step(carry, xt):
            h, c = carry
            g = xt @ p['w_ih'].T + p['b_ih'] + h @ p['w_hh'].T + p['b_hh']
            i, f, gg, o = jnp.split(g, 4, axis=-1)
            c = jax.nn.sigmoid(f) * c + jax.nn.sigmoid(i) * jnp.tanh(gg)
            h = jax.nn.sigmoid(o) * jnp.tanh(c)
            return (h, c), h
        (hN, cN), ys = jax.lax.scan(step, (h0, c0), x)
        return ys, hN, cN

    hNs, cNs = [], []
    for layer in range(model.nlayers):
        x, hN, cN = run_layer(x, model.lstm_params[layer],
                              h0_all[layer], c0_all[layer])
        hNs.append(hN)
        cNs.append(cN)
    output = jnp.transpose(x, (1, 0, 2))
    B, T, H = output.shape
    flat = output.reshape(B * T, H)
    decs = [(flat @ model.dec_weights[c].T + model.dec_biases[c]
             ).reshape(B, T, model.ntokens[c])
            for c in range(model.num_channels)]
    return decs, (jnp.stack(hNs, 0), jnp.stack(cNs, 0))


# ----------------------------------------------------------------------------
if __name__ == "__main__":
    key = jax.random.PRNGKey(0)

    ntokens = [37, 53]     # two channels
    emsize = 16
    nhid = 32
    nlayers = 2
    batch = 4
    seq = 8

    k_model, k_in0, k_in1 = jax.random.split(key, 3)
    model = RNNModelPallas(ntokens, emsize, nhid, nlayers, k_model)

    inputs = [
        jax.random.randint(k_in0, (batch, seq), 0, ntokens[0], jnp.int32),
        jax.random.randint(k_in1, (batch, seq), 0, ntokens[1], jnp.int32),
    ]
    hidden = model.init_hidden(batch)

    decs, (hN, cN) = model.forward(inputs, hidden)
    decs = [jax.block_until_ready(d) for d in decs]
    jax.block_until_ready(hN)
    jax.block_until_ready(cN)

    # Sanity check vs pure-JAX reference (unpadded weights/state).
    ref_decs, (ref_hN, ref_cN) = _reference_forward(model, inputs, hidden)
    for d, r in zip(decs, ref_decs):
        np.testing.assert_allclose(np.asarray(d), np.asarray(r),
                                   rtol=1e-4, atol=1e-4)
    np.testing.assert_allclose(np.asarray(hN), np.asarray(ref_hN),
                               rtol=1e-4, atol=1e-4)
    np.testing.assert_allclose(np.asarray(cN), np.asarray(ref_cN),
                               rtol=1e-4, atol=1e-4)

    print("KERNEL_OK")
</pallas_src>

<mosaic_0001>
module attributes {stable_mosaic.version = 11 : i64} {
  func.func @_linear_kernel(%arg0: i32, %arg1: i32, %arg2: memref<64x32xf32, #tpu.memory_space<vmem>>, %arg3: memref<32x512xf32, #tpu.memory_space<vmem>>, %arg4: memref<1x512xf32, #tpu.memory_space<vmem>>, %arg5: memref<64x512xf32, #tpu.memory_space<vmem>>) attributes {dimension_semantics = [#tpu.dimension_semantics<parallel>, #tpu.dimension_semantics<parallel>], iteration_bounds = array<i64: 1, 1>, scalar_prefetch = 0 : i64, scratch_operands = 0 : i64, tpu.core_type = #tpu.core_type<tc>, window_params = [{transform_indices = @transform_0, window_bounds = array<i64: 64, 32>}, {transform_indices = @transform_1, window_bounds = array<i64: 32, 512>}, {transform_indices = @transform_2, window_bounds = array<i64: 1, 512>}, {transform_indices = @transform_3, window_bounds = array<i64: 64, 512>}]} {
    %c0 = arith.constant 0 : index
    %c0_0 = arith.constant 0 : index
    %0 = vector.load %arg2[%c0, %c0_0] : memref<64x32xf32, #tpu.memory_space<vmem>>, vector<64x32xf32>
    %c0_1 = arith.constant 0 : index
    %c0_2 = arith.constant 0 : index
    %1 = vector.load %arg3[%c0_1, %c0_2] : memref<32x512xf32, #tpu.memory_space<vmem>>, vector<32x512xf32>
    %cst = arith.constant dense<0.000000e+00> : vector<64x512xf32>
    %2 = tpu.matmul %0, %1, %cst {dimension_numbers = #tpu.dot_dimension_numbers<[1], [0], [0], [1], [0, 0, 1, 1], [], []>} : vector<64x32xf32>, vector<32x512xf32>, vector<64x512xf32> -> vector<64x512xf32>
    %c0_3 = arith.constant 0 : index
    %c0_4 = arith.constant 0 : index
    %3 = vector.load %arg4[%c0_3, %c0_4] : memref<1x512xf32, #tpu.memory_space<vmem>>, vector<1x512xf32>
    %4 = vector.broadcast %3 : vector<1x512xf32> to vector<64x512xf32>
    %5 = arith.addf %2, %4 : vector<64x512xf32>
    %c0_5 = arith.constant 0 : index
    %c0_6 = arith.constant 0 : index
    %6 = vector.load %arg5[%c0_5, %c0_6] : memref<64x512xf32, #tpu.memory_space<vmem>>, vector<64x512xf32>
    tpu.vector_store %arg5[%c0_5, %c0_6], %5 {strides = array<i32>} : memref<64x512xf32, #tpu.memory_space<vmem>>, vector<64x512xf32>,
    return
  }
  func.func @transform_0(%arg0: i32, %arg1: i32) -> (i32, i32) {
    %c0_i32 = arith.constant 0 : i32
    %c0_i32_0 = arith.constant 0 : i32
    return %arg0, %c0_i32 : i32, i32
  }
  func.func @transform_1(%arg0: i32, %arg1: i32) -> (i32, i32) {
    %c0_i32 = arith.constant 0 : i32
    %c0_i32_0 = arith.constant 0 : i32
    return %c0_i32, %arg1 : i32, i32
  }
  func.func @transform_2(%arg0: i32, %arg1: i32) -> (i32, i32) {
    %c0_i32 = arith.constant 0 : i32
    %c0_i32_0 = arith.constant 0 : i32
    return %c0_i32, %arg1 : i32, i32
  }
  func.func @transform_3(%arg0: i32, %arg1: i32) -> (i32, i32) {
    %c0_i32 = arith.constant 0 : i32
    return %arg0, %arg1 : i32, i32
  }
}

</mosaic_0001>

<llo_original>
// kernel: tpu_custom_call.1
$region0: #{tpu_custom_call.1}
  #allocation0 [shape = 'u32[]', space=smem, size = 0x4, offset = 0x4, fixed_abs, tag = 'smem constant byte address 0x4 - core index']
  #allocation1 [shape = 'u32[144,128]{1,0:T(1,128)}', space=vmem, size = 0x12000, scoped, tag = 'internal scratch']
  %s0 = inlined_call_operand.vmem [shape: f32[64,32], index: 0, kind: input, shape index: {}]
  %s1 = inlined_call_operand.hbm [shape: f32[32,512], index: 1, kind: input, shape index: {}]
  %s2 = inlined_call_operand.vmem [shape: f32[1,512], index: 2, kind: input, shape index: {}]
  %s3 = inlined_call_operand.hbm [shape: f32[64,512], index: 3, kind: output, shape index: {}]
  %s4 = sld [smem:[#allocation0]]
  $region26: #{tpu_custom_call.1} parent=0
    _
  %s6 = ssub.s32 1, %s4
  %s7 = scalar_select 0, %s6, %s4
  $region1: #{tpu_custom_call.1} parent=0
    #allocation2 [shape = 'u8[65536]{0}', space=vmem, size = 0x10000, scoped, tag = 'input window, operand 1, single buffered']
    #allocation3 [shape = 's32[1]{0}', space=sflag, size = 0x4, scoped, tag = 'scoped memory for tpu_custom_call.1']
    #allocation4 [shape = 's32[1]{0}', space=sflag, size = 0x4, scoped, tag = 'scoped memory for tpu_custom_call.1']
    #allocation5 [shape = 'u8[131072]{0}', space=vmem, size = 0x20000, scoped, tag = 'output window, operand 0, single buffered']
    %8 = vsyncpa [#allocation3], 0
    %9 = vsyncpa [#allocation4], 0
    // Predicated region
    $region2: #{tpu_custom_call.1} parent=1 // pred_check
      _
    $region3: #{tpu_custom_call.1} parent=1 // pred_check_branch
      %11 = sbr.rel (0) target = $region5
    $region4: #{tpu_custom_call.1} parent=1 // pred_region
      _
    $region5: #{tpu_custom_call.1} parent=1 // pred_fallthru
      _
    // Predicated region
    $region6: #{tpu_custom_call.1} parent=1 // pred_check
      _
    $region7: #{tpu_custom_call.1} parent=1 // pred_check_branch
      %13 = sbr.rel (0) target = $region9
    $region8: #{tpu_custom_call.1} parent=1 // pred_region
      %s15 = ssub.s32 2048, 2048
      %16 = vsyncadd [#allocation3], %s15
      %s17 = sshll.u32 [#allocation2], 4
      %s18 = int_to_ptr.vmem [resolvable:$true] %s17
      %23 = dma.hbm_to_vmem [thread:$0]  %s1, 2048, %s18, [#allocation3], 512, 512, 32
    $region9: #{tpu_custom_call.1} parent=1 // pred_fallthru
      _
    // Predicated region
    $region10: #{tpu_custom_call.1} parent=1 // pred_check
      _
    $region11: #{tpu_custom_call.1} parent=1 // pred_check_branch
      %25 = sbr.rel (0) target = $region13
    $region12: #{tpu_custom_call.1} parent=1 // pred_region
      _
    $region13: #{tpu_custom_call.1} parent=1 // pred_fallthru
      _
    // Predicated region
    $region14: #{tpu_custom_call.1} parent=1 // pred_check
      _
    $region15: #{tpu_custom_call.1} parent=1 // pred_check_branch
      %27 = sbr.rel (0) target = $region17
    $region16: #{tpu_custom_call.1} parent=1 // pred_region
      %28 = dma.done [#allocation3], 2048
    $region17: #{tpu_custom_call.1} parent=1 // pred_fallthru
      _
    %v29 = vld [vmem:[%s0] sm:$0xff]
    %v30 = vld [vmem:[%s0 + $0x8] sm:$0xff]
    %v31 = vld [vmem:[%s0 + $0x10] sm:$0xff]
    %v32 = vld [vmem:[%s0 + $0x18] sm:$0xff]
    %v33 = vld [vmem:[%s0 + $0x20] sm:$0xff]
    %v34 = vld [vmem:[%s0 + $0x28] sm:$0xff]
    %v35 = vld [vmem:[%s0 + $0x30] sm:$0xff]
    %v36 = vld [vmem:[%s0 + $0x38] sm:$0xff]
    %v37 = vld [vmem:[#allocation2] sm:$0xff]
    %v38 = vld [vmem:[#allocation2 + $0x8] sm:$0xff]
    %v39 = vld [vmem:[#allocation2 + $0x10] sm:$0xff]
    %v40 = vld [vmem:[#allocation2 + $0x18] sm:$0xff]
    %v41 = vld [vmem:[#allocation2 + $0x20] sm:$0xff]
    %v42 = vld [vmem:[#allocation2 + $0x28] sm:$0xff]
    %v43 = vld [vmem:[#allocation2 + $0x30] sm:$0xff]
    %v44 = vld [vmem:[#allocation2 + $0x38] sm:$0xff]
    %v45 = vld [vmem:[#allocation2 + $0x40] sm:$0xff]
    %v46 = vld [vmem:[#allocation2 + $0x48] sm:$0xff]
    %v47 = vld [vmem:[#allocation2 + $0x50] sm:$0xff]
    %v48 = vld [vmem:[#allocation2 + $0x58] sm:$0xff]
    %v49 = vld [vmem:[#allocation2 + $0x60] sm:$0xff]
    %v50 = vld [vmem:[#allocation2 + $0x68] sm:$0xff]
    %v51 = vld [vmem:[#allocation2 + $0x70] sm:$0xff]
    %v52 = vld [vmem:[#allocation2 + $0x78] sm:$0xff]
    %v53 = vld [vmem:[%s2] sm:$0xf]
    %v55 = vlaneseq
    %v56 = vshrl.u32 %v55, 7
    %v57 = vsub.s32 0, %v56
    %v58 = vrot.slane %v53, %v57
    %v59 = vlaneseq
    %v60 = vshrl.u32 %v59, 7
    %v61 = vsub.s32 1, %v60
    %v62 = vrot.slane %v53, %v61
    %v63 = vlaneseq
    %v64 = vshrl.u32 %v63, 7
    %v65 = vsub.s32 2, %v64
    %v66 = vrot.slane %v53, %v65
    %v67 = vlaneseq
    %v68 = vshrl.u32 %v67, 7
    %v69 = vsub.s32 3, %v68
    %v70 = vrot.slane %v53, %v69
    %vm75 = vcmask 261120
    %v77 = vsel %vm75, %v29, 0
    %v80 = vsel %vm75, %v30, 0
    %v83 = vsel %vm75, %v31, 0
    %v86 = vsel %vm75, %v32, 0
    %v89 = vsel %vm75, %v33, 0
    %v92 = vsel %vm75, %v34, 0
    %v95 = vsel %vm75, %v35, 0
    %v98 = vsel %vm75, %v36, 0
    %100 = vmatprep.subr.mxu0 %v38
    %101 = vmatpush1.msra.mxu0 %v37
    %102 = vmatprep.subr.mxu0 %v42
    %103 = vmatpush1.msra.mxu0 %v41
    %104 = vmatprep.subr.mxu0 %v46
    %105 = vmatpush1.msra.mxu0 %v45
    %106 = vmatprep.subr.mxu0 %v50
    %107 = vmatpush1.msra.mxu0 %v49
    %108 = vmatprep.subr.mxu0 0.0
    %109 = vmatpush1.msra.mxu0 0.0
    %110 = vmatprep.subr.mxu0 0.0
    %111 = vmatpush1.msra.mxu0 0.0
    %112 = vmatprep.subr.mxu0 0.0
    %113 = vmatpush1.msra.mxu0 0.0
    %114 = vmatprep.subr.mxu0 0.0
    %115 = vmatpush1.msra.mxu0 0.0
    %116 = vmatprep.subr.mxu0 0.0
    %117 = vmatpush1.msra.mxu0 0.0
    %118 = vmatprep.subr.mxu0 0.0
    %119 = vmatpush1.msra.mxu0 0.0
    %120 = vmatprep.subr.mxu0 0.0
    %121 = vmatpush1.msra.mxu0 0.0
    %122 = vmatprep.subr.mxu0 0.0
    %123 = vmatpush1.msra.mxu0 0.0
    %124 = vmatprep.subr.mxu0 0.0
    %125 = vmatpush1.msra.mxu0 0.0
    %126 = vmatprep.subr.mxu0 0.0
    %127 = vmatpush1.msra.mxu0 0.0
    %128 = vmatprep.subr.mxu0 0.0
    %129 = vmatpush1.msra.mxu0 0.0
    %130 = vmatprep.subr.mxu0 0.0
    %131 = vmatpush1.msra.mxu0 0.0
    %132 = vmatprep.subr.mxu0 0.0
    %133 = vmatpush1.msra.mxu0 0.0
    %134 = vmatprep.subr.mxu0 0.0
    %135 = vmatpush1.msra.mxu0 0.0
    %136 = vmatprep.subr.mxu0 0.0
    %137 = vmatpush1.msra.mxu0 0.0
    %138 = vmatprep.subr.mxu0 0.0
    %139 = vmatpush1.msra.mxu0 0.0
    %140 = vmatprep.subr.mxu0 0.0
    %141 = vmatpush1.msra.mxu0 0.0
    %142 = vmatprep.subr.mxu0 0.0
    %143 = vmatpush1.msra.mxu0 0.0
    %144 = vmatprep.subr.mxu0 0.0
    %145 = vmatpush1.msra.mxu0 0.0
    %146 = vmatprep.subr.mxu0 0.0
    %147 = vmatpush1.msra.mxu0 0.0
    %148 = vmatprep.subr.mxu0 0.0
    %149 = vmatpush1.msra.mxu0 0.0
    %150 = vmatprep.subr.mxu0 0.0
    %151 = vmatpush1.msra.mxu0 0.0
    %152 = vmatprep.subr.mxu0 0.0
    %153 = vmatpush1.msra.mxu0 0.0
    %154 = vmatprep.subr.mxu0 0.0
    %155 = vmatpush1.msra.mxu0 0.0
    %156 = vmatprep.subr.mxu0 0.0
    %157 = vmatpush1.msra.mxu0 0.0
    %158 = vmatprep.subr.mxu0 0.0
    %159 = vmatpush1.msra.mxu0 0.0
    %160 = vmatprep.subr.mxu0 0.0
    %161 = vmatpush1.msra.mxu0 0.0
    %162 = vmatprep.subr.mxu0 0.0
    %163 = vmatpush1.msra.mxu0 0.0
    %164 = vmatprep.mubr.f32.mxu0 0.0
    %165 = vmatmul.mubr.f32.gmra.mrb[0].mxu0 %v77
    %v166 = vpop.f32.mrb[0].mxu0
    %v167 = vadd.f32 %v58, %v166
    %v168 = vpop.f32.mrb[0].mxu0
    %v169 = vadd.f32 %v62, %v168
    %170 = vmatprep.mubr.f32.mxu0 0.0
    %171 = vmatmul.mubr.f32.gmra.mrb[0].mxu0 %v80
    %v172 = vpop.f32.mrb[0].mxu0
    %v173 = vadd.f32 %v58, %v172
    %v174 = vpop.f32.mrb[0].mxu0
    %v175 = vadd.f32 %v62, %v174
    %176 = vmatprep.mubr.f32.mxu0 0.0
    %177 = vmatmul.mubr.f32.gmra.mrb[0].mxu0 %v83
    %v178 = vpop.f32.mrb[0].mxu0
    %v179 = vadd.f32 %v58, %v178
    %v180 = vpop.f32.mrb[0].mxu0
    %v181 = vadd.f32 %v62, %v180
    %182 = vmatprep.mubr.f32.mxu0 0.0
    %183 = vmatmul.mubr.f32.gmra.mrb[0].mxu0 %v86
    %v184 = vpop.f32.mrb[0].mxu0
    %v185 = vadd.f32 %v58, %v184
    %v186 = vpop.f32.mrb[0].mxu0
    %v187 = vadd.f32 %v62, %v186
    %188 = vmatprep.mubr.f32.mxu0 0.0
    %189 = vmatmul.mubr.f32.gmra.mrb[0].mxu0 %v89
    %v190 = vpop.f32.mrb[0].mxu0
    %v191 = vadd.f32 %v58, %v190
    %v192 = vpop.f32.mrb[0].mxu0
    %v193 = vadd.f32 %v62, %v192
    %194 = vmatprep.mubr.f32.mxu0 0.0
    %195 = vmatmul.mubr.f32.gmra.mrb[0].mxu0 %v92
    %v196 = vpop.f32.mrb[0].mxu0
    %v197 = vadd.f32 %v58, %v196
    %v198 = vpop.f32.mrb[0].mxu0
    %v199 = vadd.f32 %v62, %v198
    %200 = vmatprep.mubr.f32.mxu0 0.0
    %201 = vmatmul.mubr.f32.gmra.mrb[0].mxu0 %v95
    %v202 = vpop.f32.mrb[0].mxu0
    %v203 = vadd.f32 %v58, %v202
    %v204 = vpop.f32.mrb[0].mxu0
    %v205 = vadd.f32 %v62, %v204
    %206 = vmatprep.mubr.f32.mxu0 0.0
    %207 = vmatmul.mubr.f32.gmra.mrb[0].mxu0 %v98
    %v208 = vpop.f32.mrb[0].mxu0
    %v209 = vadd.f32 %v58, %v208
    %v210 = vpop.f32.mrb[0].mxu0
    %v211 = vadd.f32 %v62, %v210
    %212 = vdwg.mxu0
    %213 = vmatprep.subr.mxu0 %v40
    %214 = vmatpush1.msra.mxu0 %v39
    %215 = vmatprep.subr.mxu0 %v44
    %216 = vmatpush1.msra.mxu0 %v43
    %217 = vmatprep.subr.mxu0 %v48
    %218 = vmatpush1.msra.mxu0 %v47
    %219 = vmatprep.subr.mxu0 %v52
    %220 = vmatpush1.msra.mxu0 %v51
    %221 = vmatprep.subr.mxu0 0.0
    %222 = vmatpush1.msra.mxu0 0.0
    %223 = vmatprep.subr.mxu0 0.0
    %224 = vmatpush1.msra.mxu0 0.0
    %225 = vmatprep.subr.mxu0 0.0
    %226 = vmatpush1.msra.mxu0 0.0
    %227 = vmatprep.subr.mxu0 0.0
    %228 = vmatpush1.msra.mxu0 0.0
    %229 = vmatprep.subr.mxu0 0.0
    %230 = vmatpush1.msra.mxu0 0.0
    %231 = vmatprep.subr.mxu0 0.0
    %232 = vmatpush1.msra.mxu0 0.0
    %233 = vmatprep.subr.mxu0 0.0
    %234 = vmatpush1.msra.mxu0 0.0
    %235 = vmatprep.subr.mxu0 0.0
    %236 = vmatpush1.msra.mxu0 0.0
    %237 = vmatprep.subr.mxu0 0.0
    %238 = vmatpush1.msra.mxu0 0.0
    %239 = vmatprep.subr.mxu0 0.0
    %240 = vmatpush1.msra.mxu0 0.0
    %241 = vmatprep.subr.mxu0 0.0
    %242 = vmatpush1.msra.mxu0 0.0
    %243 = vmatprep.subr.mxu0 0.0
    %244 = vmatpush1.msra.mxu0 0.0
    %245 = vmatprep.subr.mxu0 0.0
    %246 = vmatpush1.msra.mxu0 0.0
    %247 = vmatprep.subr.mxu0 0.0
    %248 = vmatpush1.msra.mxu0 0.0
    %249 = vmatprep.subr.mxu0 0.0
    %250 = vmatpush1.msra.mxu0 0.0
    %251 = vmatprep.subr.mxu0 0.0
    %252 = vmatpush1.msra.mxu0 0.0
    %253 = vmatprep.subr.mxu0 0.0
    %254 = vmatpush1.msra.mxu0 0.0
    %255 = vmatprep.subr.mxu0 0.0
    %256 = vmatpush1.msra.mxu0 0.0
    %257 = vmatprep.subr.mxu0 0.0
    %258 = vmatpush1.msra.mxu0 0.0
    %259 = vmatprep.subr.mxu0 0.0
    %260 = vmatpush1.msra.mxu0 0.0
    %261 = vmatprep.subr.mxu0 0.0
    %262 = vmatpush1.msra.mxu0 0.0
    %263 = vmatprep.subr.mxu0 0.0
    %264 = vmatpush1.msra.mxu0 0.0
    %265 = vmatprep.subr.mxu0 0.0
    %266 = vmatpush1.msra.mxu0 0.0
    %267 = vmatprep.subr.mxu0 0.0
    %268 = vmatpush1.msra.mxu0 0.0
    %269 = vmatprep.subr.mxu0 0.0
    %270 = vmatpush1.msra.mxu0 0.0
    %271 = vmatprep.subr.mxu0 0.0
    %272 = vmatpush1.msra.mxu0 0.0
    %273 = vmatprep.subr.mxu0 0.0
    %274 = vmatpush1.msra.mxu0 0.0
    %275 = vmatprep.subr.mxu0 0.0
    %276 = vmatpush1.msra.mxu0 0.0
    %277 = vmatprep.mubr.f32.mxu0 0.0
    %278 = vmatmul.mubr.f32.gmra.mrb[0].mxu0 %v77
    %v279 = vpop.f32.mrb[0].mxu0
    %v280 = vadd.f32 %v66, %v279
    %v281 = vpop.f32.mrb[0].mxu0
    %v282 = vadd.f32 %v70, %v281
    %283 = vmatprep.mubr.f32.mxu0 0.0
    %284 = vmatmul.mubr.f32.gmra.mrb[0].mxu0 %v80
    %v285 = vpop.f32.mrb[0].mxu0
    %v286 = vadd.f32 %v66, %v285
    %v287 = vpop.f32.mrb[0].mxu0
    %v288 = vadd.f32 %v70, %v287
    %289 = vmatprep.mubr.f32.mxu0 0.0
    %290 = vmatmul.mubr.f32.gmra.mrb[0].mxu0 %v83
    %v291 = vpop.f32.mrb[0].mxu0
    %v292 = vadd.f32 %v66, %v291
    %v293 = vpop.f32.mrb[0].mxu0
    %v294 = vadd.f32 %v70, %v293
    %295 = vmatprep.mubr.f32.mxu0 0.0
    %296 = vmatmul.mubr.f32.gmra.mrb[0].mxu0 %v86
    %v297 = vpop.f32.mrb[0].mxu0
    %v298 = vadd.f32 %v66, %v297
    %v299 = vpop.f32.mrb[0].mxu0
    %v300 = vadd.f32 %v70, %v299
    %301 = vmatprep.mubr.f32.mxu0 0.0
    %302 = vmatmul.mubr.f32.gmra.mrb[0].mxu0 %v89
    %v303 = vpop.f32.mrb[0].mxu0
    %v304 = vadd.f32 %v66, %v303
    %v305 = vpop.f32.mrb[0].mxu0
    %v306 = vadd.f32 %v70, %v305
    %307 = vmatprep.mubr.f32.mxu0 0.0
    %308 = vmatmul.mubr.f32.gmra.mrb[0].mxu0 %v92
    %v309 = vpop.f32.mrb[0].mxu0
    %v310 = vadd.f32 %v66, %v309
    %v311 = vpop.f32.mrb[0].mxu0
    %v312 = vadd.f32 %v70, %v311
    %313 = vmatprep.mubr.f32.mxu0 0.0
    %314 = vmatmul.mubr.f32.gmra.mrb[0].mxu0 %v95
    %v315 = vpop.f32.mrb[0].mxu0
    %v316 = vadd.f32 %v66, %v315
    %v317 = vpop.f32.mrb[0].mxu0
    %v318 = vadd.f32 %v70, %v317
    %319 = vmatprep.mubr.f32.mxu0 0.0
    %320 = vmatmul.mubr.f32.gmra.mrb[0].mxu0 %v98
    %v321 = vpop.f32.mrb[0].mxu0
    %v322 = vadd.f32 %v66, %v321
    %v323 = vpop.f32.mrb[0].mxu0
    %v324 = vadd.f32 %v70, %v323
    %325 = vdwg.mxu0
    %326 = vst [vmem:[#allocation5] sm:$0xff] %v167
    %327 = vst [vmem:[#allocation5 + $0x8] sm:$0xff] %v169
    %328 = vst [vmem:[#allocation5 + $0x10] sm:$0xff] %v280
    %329 = vst [vmem:[#allocation5 + $0x18] sm:$0xff] %v282
    %330 = vst [vmem:[#allocation5 + $0x20] sm:$0xff] %v173
    %331 = vst [vmem:[#allocation5 + $0x28] sm:$0xff] %v175
    %332 = vst [vmem:[#allocation5 + $0x30] sm:$0xff] %v286
    %333 = vst [vmem:[#allocation5 + $0x38] sm:$0xff] %v288
    %334 = vst [vmem:[#allocation5 + $0x40] sm:$0xff] %v179
    %335 = vst [vmem:[#allocation5 + $0x48] sm:$0xff] %v181
    %336 = vst [vmem:[#allocation5 + $0x50] sm:$0xff] %v292
    %337 = vst [vmem:[#allocation5 + $0x58] sm:$0xff] %v294
    %338 = vst [vmem:[#allocation5 + $0x60] sm:$0xff] %v185
    %339 = vst [vmem:[#allocation5 + $0x68] sm:$0xff] %v187
    %340 = vst [vmem:[#allocation5 + $0x70] sm:$0xff] %v298
    %341 = vst [vmem:[#allocation5 + $0x78] sm:$0xff] %v300
    %342 = vst [vmem:[#allocation5 + $0x80] sm:$0xff] %v191
    %343 = vst [vmem:[#allocation5 + $0x88] sm:$0xff] %v193
    %344 = vst [vmem:[#allocation5 + $0x90] sm:$0xff] %v304
    %345 = vst [vmem:[#allocation5 + $0x98] sm:$0xff] %v306
    %346 = vst [vmem:[#allocation5 + $0xa0] sm:$0xff] %v197
    %347 = vst [vmem:[#allocation5 + $0xa8] sm:$0xff] %v199
    %348 = vst [vmem:[#allocation5 + $0xb0] sm:$0xff] %v310
    %349 = vst [vmem:[#allocation5 + $0xb8] sm:$0xff] %v312
    %350 = vst [vmem:[#allocation5 + $0xc0] sm:$0xff] %v203
    %351 = vst [vmem:[#allocation5 + $0xc8] sm:$0xff] %v205
    %352 = vst [vmem:[#allocation5 + $0xd0] sm:$0xff] %v316
    %353 = vst [vmem:[#allocation5 + $0xd8] sm:$0xff] %v318
    %354 = vst [vmem:[#allocation5 + $0xe0] sm:$0xff] %v209
    %355 = vst [vmem:[#allocation5 + $0xe8] sm:$0xff] %v211
    %356 = vst [vmem:[#allocation5 + $0xf0] sm:$0xff] %v322
    %357 = vst [vmem:[#allocation5 + $0xf8] sm:$0xff] %v324
    // Predicated region
    $region18: #{tpu_custom_call.1} parent=1 // pred_check
      _
    $region19: #{tpu_custom_call.1} parent=1 // pred_check_branch
      %359 = sbr.rel (0) target = $region21
    $region20: #{tpu_custom_call.1} parent=1 // pred_region
      %s361 = ssub.s32 4096, 4096
      %362 = vsyncadd [#allocation4], %s361
      %s363 = sshll.u32 [#allocation5], 4
      %s364 = int_to_ptr.vmem [resolvable:$true] %s363
      %369 = dma.vmem_to_hbm [thread:$0]  %s364, 4096, %s3, [#allocation4], 512, 512, 32
    $region21: #{tpu_custom_call.1} parent=1 // pred_fallthru
      _
    // Predicated region
    $region22: #{tpu_custom_call.1} parent=1 // pred_check
      _
    $region23: #{tpu_custom_call.1} parent=1 // pred_check_branch
      %371 = sbr.rel (0) target = $region25
    $region24: #{tpu_custom_call.1} parent=1 // pred_region
      %372 = dma.done [#allocation4], 4096
    $region25: #{tpu_custom_call.1} parent=1 // pred_fallthru
      _
    %373 = vsyncpa [#allocation3], 1
    %374 = vsyncpa [#allocation4], 1

</llo_original>
